<compile_context>
chip_gen: v6e
topology: v6e:2x2x1
jax: 0.10.0
libtpu: 0.0.40
codegen_flags: <defaults>
</compile_context>

<pallas_src>
import jax
import jax.numpy as jnp
from jax.experimental import pallas as pl
from jax.experimental.pallas import tpu as pltpu

LANE = 128     # last-dim (lane) granularity for padded feature dims
SUBLANE = 16   # batch-tile granularity (bf16 sublane packing)


def _round_up(n, m):
    return ((n + m - 1) // m) * m


def _pad2d(x, rows, cols):
    pr, pc = rows - x.shape[0], cols - x.shape[1]
    if pr or pc:
        x = jnp.pad(x, ((0, pr), (0, pc)))
    return x


def _tpu_generation():
    try:
        kind = jax.devices()[0].device_kind.lower()
    except Exception:
        kind = ""
    if "v7" in kind:
        return "v7x"
    if "v6" in kind:
        return "v6e"
    if "v5" in kind:
        return "v5e"
    return "other"


def _vmem_estimate_bytes(tm, in_dim, hid_p, out_p, out_itemsize, w_itemsize):
    """Rough per-step VMEM footprint for the fused kernel."""
    weights = (in_dim * hid_p + hid_p * hid_p + hid_p * out_p) * w_itemsize  # 1-buf
    biases = (2 * hid_p + out_p) * 4
    z_tiles = 2 * tm * in_dim * 4            # f32 z, double-buffered
    out_tiles = 2 * tm * out_p * out_itemsize
    inter = tm * hid_p * (4 + 2) * 2         # h1/h2 f32 + bf16 recasts
    return weights + biases + z_tiles + out_tiles + inter


def gan_generator_kernel(z_ref, w1_ref, b1_ref, w2_ref, b2_ref, w3_ref, b3_ref,
                         out_ref):
    # Cast z tile to the MXU compute dtype inside the kernel (saves an HBM pass).
    z = z_ref[...].astype(w1_ref.dtype)
    # Layer 1: Linear (bf16 MXU, f32 accumulate) + bias + ReLU (f32 VPU)
    h1 = jnp.dot(z, w1_ref[...], preferred_element_type=jnp.float32)
    h1 = jnp.maximum(h1 + b1_ref[...], 0.0).astype(w2_ref.dtype)
    # Layer 2: Linear + bias + ReLU
    h2 = jnp.dot(h1, w2_ref[...], preferred_element_type=jnp.float32)
    h2 = jnp.maximum(h2 + b2_ref[...], 0.0).astype(w3_ref.dtype)
    # Layer 3: Linear + bias (no activation)
    out = jnp.dot(h2, w3_ref[...], preferred_element_type=jnp.float32)
    out_ref[...] = (out + b3_ref[...]).astype(out_ref.dtype)


def prepare_generator_params(params, compute_dtype=jnp.bfloat16):
    """One-time pad + cast of the weights/biases (call once, reuse per forward).

    Feature dims (hidden, output) are padded to multiples of 128 (lane-dense,
    exact because padding is zero). The input dim is left unpadded so z can be
    fed directly without a host-side pad/cast pass.
    """
    w1, b1 = params["w1"], params["b1"]
    w2, b2 = params["w2"], params["b2"]
    w3, b3 = params["w3"], params["b3"]

    in_dim, hid = w1.shape
    out_dim = w3.shape[1]
    hid_p = _round_up(hid, LANE)
    out_p = _round_up(out_dim, LANE)

    prepared = {
        "w1": _pad2d(w1, in_dim, hid_p).astype(compute_dtype),
        "b1": _pad2d(b1.reshape(1, -1), 1, hid_p).astype(jnp.float32),
        "w2": _pad2d(w2, hid_p, hid_p).astype(compute_dtype),
        "b2": _pad2d(b2.reshape(1, -1), 1, hid_p).astype(jnp.float32),
        "w3": _pad2d(w3, hid_p, out_p).astype(compute_dtype),
        "b3": _pad2d(b3.reshape(1, -1), 1, out_p).astype(jnp.float32),
    }
    prepared = jax.block_until_ready(prepared)  # materialize the cache now
    dims = {"in_dim": in_dim, "hid": hid, "out_dim": out_dim,
            "hid_p": hid_p, "out_p": out_p}
    return prepared, dims


def gan_generator_forward(z, prepared, dims, *, out_dtype=jnp.float32,
                          tile_m=None):
    """Fused 3-layer MLP forward.  z: (B, in_dim) f32 -> (B, out_dim)."""
    B, in_dim = z.shape
    assert in_dim == dims["in_dim"], (in_dim, dims["in_dim"])
    hid_p, out_p, out_dim = dims["hid_p"], dims["out_p"], dims["out_dim"]

    w_itemsize = prepared["w1"].dtype.itemsize
    out_itemsize = jnp.dtype(out_dtype).itemsize

    gen = _tpu_generation()
    num_tc = 2 if gen == "v7x" else 1
    vmem_budget = (48 if gen == "v7x" else 100) * 1024 * 1024

    # --- Batch tile selection (per generation) ------------------------------
    if tile_m is None:
        # Single TC (v5e/v6e): whole batch in one fat step. Dual TC (v7x):
        # at least 2 steps so both cores get work.
        n_steps = num_tc
        align = 256 if (gen == "v6e" and B >= 256) else SUBLANE
        tm = _round_up(-(-B // n_steps), align)
    else:
        tm = _round_up(min(tile_m, _round_up(B, SUBLANE)), SUBLANE)
    # Shrink the tile if the per-step VMEM estimate would blow the budget.
    while (_vmem_estimate_bytes(tm, in_dim, hid_p, out_p, out_itemsize,
                                w_itemsize) > vmem_budget and tm > SUBLANE):
        tm = _round_up(max(tm // 2, SUBLANE), SUBLANE)

    b_p = _round_up(B, tm)
    grid = (b_p // tm,)

    # Batch padding only when B is not a tile multiple (no feature pad, no cast).
    z_p = _pad2d(z, b_p, in_dim)

    # NOTE: for very large hidden dims on v7x (hid_p*hid_p*2B > ~1/4 of VMEM),
    # resident weights should be replaced by a K-tiled reduction grid axis with
    # an f32 accumulator scratch; not needed at these shapes.
    vmem_est = _vmem_estimate_bytes(tm, in_dim, hid_p, out_p, out_itemsize,
                                    w_itemsize)
    vmem_limit = int(min(vmem_budget, vmem_est * 3 // 2 + (4 << 20)))

    # --- Block specs ---------------------------------------------------------
    z_spec = pl.BlockSpec((tm, in_dim), lambda i: (i, 0))
    out_spec = pl.BlockSpec((tm, out_p), lambda i: (i, 0))

    def resident(a):
        # Constant index_map => the block never changes; single-buffer it.
        return pl.BlockSpec(a.shape, lambda i: (0, 0),
                            pipeline_mode=pl.Buffered(1))

    flops = 2 * b_p * (in_dim * hid_p + hid_p * hid_p + hid_p * out_p)
    bytes_accessed = (
        b_p * in_dim * 4
        + (in_dim * hid_p + hid_p * hid_p + hid_p * out_p) * w_itemsize
        + (2 * hid_p + out_p) * 4
        + b_p * out_p * out_itemsize
    )

    out_padded = pl.pallas_call(
        gan_generator_kernel,
        out_shape=jax.ShapeDtypeStruct((b_p, out_p), out_dtype),
        grid=grid,
        in_specs=[z_spec,
                  resident(prepared["w1"]), resident(prepared["b1"]),
                  resident(prepared["w2"]), resident(prepared["b2"]),
                  resident(prepared["w3"]), resident(prepared["b3"])],
        out_specs=out_spec,
        compiler_params=pltpu.CompilerParams(
            dimension_semantics=("parallel",),   # v7x: shard batch over 2 TCs
            vmem_limit_bytes=vmem_limit,
        ),
        cost_estimate=pl.CostEstimate(
            flops=flops, transcendentals=0, bytes_accessed=bytes_accessed),
    )(z_p, prepared["w1"], prepared["b1"], prepared["w2"], prepared["b2"],
      prepared["w3"], prepared["b3"])

    return out_padded[:B, :out_dim]


def init_params(key, noise_dim, hidden_dim, output_dim,
                use_signature=False, sig_dim=0):
    """Deterministic synthetic init matching the nn.Module shapes.

    Weights stored as (in_features, out_features) == W.T of PyTorch Linear.
    """
    input_dim = noise_dim + (sig_dim if use_signature else 0)
    ks = jax.random.split(key, 6)

    def uniform(k, shape, fan_in):
        bound = 1.0 / jnp.sqrt(jnp.float32(fan_in))
        return jax.random.uniform(k, shape, jnp.float32, -bound, bound)

    return {
        "w1": uniform(ks[0], (input_dim, hidden_dim), input_dim),
        "b1": uniform(ks[1], (1, hidden_dim), input_dim),
        "w2": uniform(ks[2], (hidden_dim, hidden_dim), hidden_dim),
        "b2": uniform(ks[3], (1, hidden_dim), hidden_dim),
        "w3": uniform(ks[4], (hidden_dim, output_dim), hidden_dim),
        "b3": uniform(ks[5], (1, output_dim), hidden_dim),
    }


def reference_forward(z, p, compute_dtype=jnp.bfloat16):
    """Pure-JAX reference using the same bf16-compute / f32-accumulate recipe."""
    w1 = p["w1"].astype(compute_dtype)
    w2 = p["w2"].astype(compute_dtype)
    w3 = p["w3"].astype(compute_dtype)
    h1 = jnp.dot(z.astype(compute_dtype), w1,
                 preferred_element_type=jnp.float32) + p["b1"]
    h1 = jnp.maximum(h1, 0.0).astype(compute_dtype)
    h2 = jnp.dot(h1, w2, preferred_element_type=jnp.float32) + p["b2"]
    h2 = jnp.maximum(h2, 0.0).astype(compute_dtype)
    return jnp.dot(h2, w3, preferred_element_type=jnp.float32) + p["b3"]


if __name__ == "__main__":
    key = jax.random.PRNGKey(0)
    k_param, k_z = jax.random.split(key)

    # MXU-relevant but still small shapes. noise_dim / output_dim are
    # deliberately NOT multiples of 128 to exercise the padding path.
    batch = 256
    noise_dim = 64
    hidden_dim = 256
    output_dim = 96

    params = init_params(k_param, noise_dim, hidden_dim, output_dim)
    z = jax.random.normal(k_z, (batch, noise_dim), jnp.float32)

    # One-time weight prep (cached); per-call path only touches z + kernel.
    prepared, dims = prepare_generator_params(params)

    out = gan_generator_forward(z, prepared, dims)
    jax.block_until_ready(out)

    ref = reference_forward(z, params)
    assert out.shape == (batch, output_dim), out.shape
    assert jnp.allclose(out, ref, atol=2e-2, rtol=2e-2), (
        float(jnp.max(jnp.abs(out - ref))))

    print("KERNEL_OK")
</pallas_src>

<mosaic_0001>
module attributes {stable_mosaic.version = 11 : i64} {
  func.func @gan_generator_kernel(%arg0: i32, %arg1: memref<256x64xf32, #tpu.memory_space<vmem>>, %arg2: memref<64x256xbf16, #tpu.memory_space<vmem>>, %arg3: memref<1x256xf32, #tpu.memory_space<vmem>>, %arg4: memref<256x256xbf16, #tpu.memory_space<vmem>>, %arg5: memref<1x256xf32, #tpu.memory_space<vmem>>, %arg6: memref<256x128xbf16, #tpu.memory_space<vmem>>, %arg7: memref<1x128xf32, #tpu.memory_space<vmem>>, %arg8: memref<256x128xf32, #tpu.memory_space<vmem>>) attributes {dimension_semantics = [#tpu.dimension_semantics<parallel>], iteration_bounds = array<i64: 1>, scalar_prefetch = 0 : i64, scratch_operands = 0 : i64, tpu.core_type = #tpu.core_type<tc>, window_params = [{transform_indices = @transform_0, window_bounds = array<i64: 256, 64>}, {pipeline_mode = #tpu.pipeline_mode<synchronous>, transform_indices = @transform_1, window_bounds = array<i64: 64, 256>}, {pipeline_mode = #tpu.pipeline_mode<synchronous>, transform_indices = @transform_2, window_bounds = array<i64: 1, 256>}, {pipeline_mode = #tpu.pipeline_mode<synchronous>, transform_indices = @transform_3, window_bounds = array<i64: 256, 256>}, {pipeline_mode = #tpu.pipeline_mode<synchronous>, transform_indices = @transform_4, window_bounds = array<i64: 1, 256>}, {pipeline_mode = #tpu.pipeline_mode<synchronous>, transform_indices = @transform_5, window_bounds = array<i64: 256, 128>}, {pipeline_mode = #tpu.pipeline_mode<synchronous>, transform_indices = @transform_6, window_bounds = array<i64: 1, 128>}, {transform_indices = @transform_7, window_bounds = array<i64: 256, 128>}]} {
    %c0 = arith.constant 0 : index
    %c0_0 = arith.constant 0 : index
    %0 = vector.load %arg1[%c0, %c0_0] : memref<256x64xf32, #tpu.memory_space<vmem>>, vector<256x64xf32>
    %1 = arith.truncf %0 : vector<256x64xf32> to vector<256x64xbf16>
    %c0_1 = arith.constant 0 : index
    %c0_2 = arith.constant 0 : index
    %2 = vector.load %arg2[%c0_1, %c0_2] : memref<64x256xbf16, #tpu.memory_space<vmem>>, vector<64x256xbf16>
    %cst = arith.constant dense<0.000000e+00> : vector<256x256xf32>
    %3 = tpu.matmul %1, %2, %cst {dimension_numbers = #tpu.dot_dimension_numbers<[1], [0], [0], [1], [0, 0, 1, 1], [], []>} : vector<256x64xbf16>, vector<64x256xbf16>, vector<256x256xf32> -> vector<256x256xf32>
    %c0_3 = arith.constant 0 : index
    %c0_4 = arith.constant 0 : index
    %4 = vector.load %arg3[%c0_3, %c0_4] : memref<1x256xf32, #tpu.memory_space<vmem>>, vector<1x256xf32>
    %5 = vector.broadcast %4 : vector<1x256xf32> to vector<256x256xf32>
    %6 = arith.addf %3, %5 : vector<256x256xf32>
    %cst_5 = arith.constant 0.000000e+00 : f32
    %7 = vector.broadcast %cst_5 : f32 to vector<256x256xf32>
    %8 = arith.maximumf %6, %7 : vector<256x256xf32>
    %9 = arith.truncf %8 : vector<256x256xf32> to vector<256x256xbf16>
    %c0_6 = arith.constant 0 : index
    %c0_7 = arith.constant 0 : index
    %10 = vector.load %arg4[%c0_6, %c0_7] : memref<256x256xbf16, #tpu.memory_space<vmem>>, vector<256x256xbf16>
    %cst_8 = arith.constant dense<0.000000e+00> : vector<256x256xf32>
    %11 = tpu.matmul %9, %10, %cst_8 {dimension_numbers = #tpu.dot_dimension_numbers<[1], [0], [0], [1], [0, 0, 1, 1], [], []>} : vector<256x256xbf16>, vector<256x256xbf16>, vector<256x256xf32> -> vector<256x256xf32>
    %c0_9 = arith.constant 0 : index
    %c0_10 = arith.constant 0 : index
    %12 = vector.load %arg5[%c0_9, %c0_10] : memref<1x256xf32, #tpu.memory_space<vmem>>, vector<1x256xf32>
    %13 = vector.broadcast %12 : vector<1x256xf32> to vector<256x256xf32>
    %14 = arith.addf %11, %13 : vector<256x256xf32>
    %cst_11 = arith.constant 0.000000e+00 : f32
    %15 = vector.broadcast %cst_11 : f32 to vector<256x256xf32>
    %16 = arith.maximumf %14, %15 : vector<256x256xf32>
    %17 = arith.truncf %16 : vector<256x256xf32> to vector<256x256xbf16>
    %c0_12 = arith.constant 0 : index
    %c0_13 = arith.constant 0 : index
    %18 = vector.load %arg6[%c0_12, %c0_13] : memref<256x128xbf16, #tpu.memory_space<vmem>>, vector<256x128xbf16>
    %cst_14 = arith.constant dense<0.000000e+00> : vector<256x128xf32>
    %19 = tpu.matmul %17, %18, %cst_14 {dimension_numbers = #tpu.dot_dimension_numbers<[1], [0], [0], [1], [0, 0, 1, 1], [], []>} : vector<256x256xbf16>, vector<256x128xbf16>, vector<256x128xf32> -> vector<256x128xf32>
    %c0_15 = arith.constant 0 : index
    %c0_16 = arith.constant 0 : index
    %20 = vector.load %arg7[%c0_15, %c0_16] : memref<1x128xf32, #tpu.memory_space<vmem>>, vector<1x128xf32>
    %21 = vector.broadcast %20 : vector<1x128xf32> to vector<256x128xf32>
    %22 = arith.addf %19, %21 : vector<256x128xf32>
    %c0_17 = arith.constant 0 : index
    %c0_18 = arith.constant 0 : index
    %23 = vector.load %arg8[%c0_17, %c0_18] : memref<256x128xf32, #tpu.memory_space<vmem>>, vector<256x128xf32>
    tpu.vector_store %arg8[%c0_17, %c0_18], %22 {strides = array<i32>} : memref<256x128xf32, #tpu.memory_space<vmem>>, vector<256x128xf32>,
    return
  }
  func.func @transform_0(%arg0: i32) -> (i32, i32) {
    %c0_i32 = arith.constant 0 : i32
    %c0_i32_0 = arith.constant 0 : i32
    return %arg0, %c0_i32 : i32, i32
  }
  func.func @transform_1(%arg0: i32) -> (i32, i32) {
    %c0_i32 = arith.constant 0 : i32
    %c0_i32_0 = arith.constant 0 : i32
    %c0_i32_1 = arith.constant 0 : i32
    return %c0_i32, %c0_i32_0 : i32, i32
  }
  func.func @transform_2(%arg0: i32) -> (i32, i32) {
    %c0_i32 = arith.constant 0 : i32
    %c0_i32_0 = arith.constant 0 : i32
    %c0_i32_1 = arith.constant 0 : i32
    return %c0_i32, %c0_i32_0 : i32, i32
  }
  func.func @transform_3(%arg0: i32) -> (i32, i32) {
    %c0_i32 = arith.constant 0 : i32
    %c0_i32_0 = arith.constant 0 : i32
    %c0_i32_1 = arith.constant 0 : i32
    return %c0_i32, %c0_i32_0 : i32, i32
  }
  func.func @transform_4(%arg0: i32) -> (i32, i32) {
    %c0_i32 = arith.constant 0 : i32
    %c0_i32_0 = arith.constant 0 : i32
    %c0_i32_1 = arith.constant 0 : i32
    return %c0_i32, %c0_i32_0 : i32, i32
  }
  func.func @transform_5(%arg0: i32) -> (i32, i32) {
    %c0_i32 = arith.constant 0 : i32
    %c0_i32_0 = arith.constant 0 : i32
    %c0_i32_1 = arith.constant 0 : i32
    return %c0_i32, %c0_i32_0 : i32, i32
  }
  func.func @transform_6(%arg0: i32) -> (i32, i32) {
    %c0_i32 = arith.constant 0 : i32
    %c0_i32_0 = arith.constant 0 : i32
    %c0_i32_1 = arith.constant 0 : i32
    return %c0_i32, %c0_i32_0 : i32, i32
  }
  func.func @transform_7(%arg0: i32) -> (i32, i32) {
    %c0_i32 = arith.constant 0 : i32
    %c0_i32_0 = arith.constant 0 : i32
    return %arg0, %c0_i32 : i32, i32
  }
}

</mosaic_0001>

<llo_original>
// kernel: tpu_custom_call.1
$region0: #{tpu_custom_call.1}
  #allocation0 [shape = 'u32[]', space=smem, size = 0x4, offset = 0x4, fixed_abs, tag = 'smem constant byte address 0x4 - core index']
  #allocation1 [shape = 'u32[144,128]{1,0:T(1,128)}', space=vmem, size = 0x12000, scoped, tag = 'internal scratch']
  %s0 = inlined_call_operand.vmem [shape: f32[256,64], index: 0, kind: input, shape index: {}]
  %s1 = inlined_call_operand.hbm [shape: bf16[64,256], index: 1, kind: input, shape index: {}]
  %s2 = inlined_call_operand.vmem [shape: f32[1,256], index: 2, kind: input, shape index: {}]
  %s3 = inlined_call_operand.vmem [shape: bf16[256,256], index: 3, kind: input, shape index: {}]
  %s4 = inlined_call_operand.vmem [shape: f32[1,256], index: 4, kind: input, shape index: {}]
  %s5 = inlined_call_operand.vmem [shape: bf16[256,128], index: 5, kind: input, shape index: {}]
  %s6 = inlined_call_operand.vmem [shape: f32[1,128], index: 6, kind: input, shape index: {}]
  %s7 = inlined_call_operand.hbm [shape: f32[256,128], index: 7, kind: output, shape index: {}]
  %s8 = sld [smem:[#allocation0]]
  $region42: #{tpu_custom_call.1} parent=0
    _
  %s10 = ssub.s32 1, %s8
  %s11 = scalar_select 0, %s10, %s8
  $region1: #{tpu_custom_call.1} parent=0
    #allocation2 [shape = 'u8[32768]{0}', space=vmem, size = 0x8000, scoped, tag = 'input window, operand 1, single buffered']
    #allocation3 [shape = 's32[1]{0}', space=sflag, size = 0x4, scoped, tag = 'scoped memory for tpu_custom_call.1']
    #allocation4 [shape = 's32[1]{0}', space=sflag, size = 0x4, scoped, tag = 'scoped memory for tpu_custom_call.1']
    #allocation5 [shape = 'u8[131072]{0}', space=vmem, size = 0x20000, scoped, tag = 'output window, operand 0, single buffered']
    %12 = vsyncpa [#allocation3], 0
    %13 = vsyncpa [#allocation4], 0
    // Predicated region
    $region2: #{tpu_custom_call.1} parent=1 // pred_check
      _
    $region3: #{tpu_custom_call.1} parent=1 // pred_check_branch
      %15 = sbr.rel (0) target = $region5
    $region4: #{tpu_custom_call.1} parent=1 // pred_region
      _
    $region5: #{tpu_custom_call.1} parent=1 // pred_fallthru
      _
    // Predicated region
    $region6: #{tpu_custom_call.1} parent=1 // pred_check
      _
    $region7: #{tpu_custom_call.1} parent=1 // pred_check_branch
      %17 = sbr.rel (0) target = $region9
    $region8: #{tpu_custom_call.1} parent=1 // pred_region
      %s19 = ssub.s32 1024, 1024
      %20 = vsyncadd [#allocation3], %s19
      %s21 = sshll.u32 [#allocation2], 4
      %s22 = int_to_ptr.vmem [resolvable:$true] %s21
      %27 = dma.hbm_to_vmem [thread:$0]  %s1, 1024, %s22, [#allocation3], 128, 128, 8
    $region9: #{tpu_custom_call.1} parent=1 // pred_fallthru
      _
    // Predicated region
    $region10: #{tpu_custom_call.1} parent=1 // pred_check
      _
    $region11: #{tpu_custom_call.1} parent=1 // pred_check_branch
      %29 = sbr.rel (0) target = $region13
    $region12: #{tpu_custom_call.1} parent=1 // pred_region
      _
    $region13: #{tpu_custom_call.1} parent=1 // pred_fallthru
      _
    // Predicated region
    $region14: #{tpu_custom_call.1} parent=1 // pred_check
      _
    $region15: #{tpu_custom_call.1} parent=1 // pred_check_branch
      %31 = sbr.rel (0) target = $region17
    $region16: #{tpu_custom_call.1} parent=1 // pred_region
      _
    $region17: #{tpu_custom_call.1} parent=1 // pred_fallthru
      _
    // Predicated region
    $region18: #{tpu_custom_call.1} parent=1 // pred_check
      _
    $region19: #{tpu_custom_call.1} parent=1 // pred_check_branch
      %33 = sbr.rel (0) target = $region21
    $region20: #{tpu_custom_call.1} parent=1 // pred_region
      _
    $region21: #{tpu_custom_call.1} parent=1 // pred_fallthru
      _
    // Predicated region
    $region22: #{tpu_custom_call.1} parent=1 // pred_check
      _
    $region23: #{tpu_custom_call.1} parent=1 // pred_check_branch
      %35 = sbr.rel (0) target = $region25
    $region24: #{tpu_custom_call.1} parent=1 // pred_region
      _
    $region25: #{tpu_custom_call.1} parent=1 // pred_fallthru
      _
    // Predicated region
    $region26: #{tpu_custom_call.1} parent=1 // pred_check
      _
    $region27: #{tpu_custom_call.1} parent=1 // pred_check_branch
      %37 = sbr.rel (0) target = $region29
    $region28: #{tpu_custom_call.1} parent=1 // pred_region
      _
    $region29: #{tpu_custom_call.1} parent=1 // pred_fallthru
      _
    // Predicated region
    $region30: #{tpu_custom_call.1} parent=1 // pred_check
      _
    $region31: #{tpu_custom_call.1} parent=1 // pred_check_branch
      %39 = sbr.rel (0) target = $region33
    $region32: #{tpu_custom_call.1} parent=1 // pred_region
      %40 = dma.done [#allocation3], 1024
    $region33: #{tpu_custom_call.1} parent=1 // pred_fallthru
      _
    %v42 = vld [vmem:[%s0] sm:$0xff]
    %v43 = vld [vmem:[%s0 + $0x8] sm:$0xff]
    %v44 = vld [vmem:[%s0 + $0x10] sm:$0xff]
    %v45 = vld [vmem:[%s0 + $0x18] sm:$0xff]
    %v46 = vld [vmem:[%s0 + $0x20] sm:$0xff]
    %v47 = vld [vmem:[%s0 + $0x28] sm:$0xff]
    %v48 = vld [vmem:[%s0 + $0x30] sm:$0xff]
    %v49 = vld [vmem:[%s0 + $0x38] sm:$0xff]
    %v50 = vld [vmem:[%s0 + $0x40] sm:$0xff]
    %v51 = vld [vmem:[%s0 + $0x48] sm:$0xff]
    %v52 = vld [vmem:[%s0 + $0x50] sm:$0xff]
    %v53 = vld [vmem:[%s0 + $0x58] sm:$0xff]
    %v54 = vld [vmem:[%s0 + $0x60] sm:$0xff]
    %v55 = vld [vmem:[%s0 + $0x68] sm:$0xff]
    %v56 = vld [vmem:[%s0 + $0x70] sm:$0xff]
    %v57 = vld [vmem:[%s0 + $0x78] sm:$0xff]
    %v58 = vld [vmem:[%s0 + $0x80] sm:$0xff]
    %v59 = vld [vmem:[%s0 + $0x88] sm:$0xff]
    %v60 = vld [vmem:[%s0 + $0x90] sm:$0xff]
    %v61 = vld [vmem:[%s0 + $0x98] sm:$0xff]
    %v62 = vld [vmem:[%s0 + $0xa0] sm:$0xff]
    %v63 = vld [vmem:[%s0 + $0xa8] sm:$0xff]
    %v64 = vld [vmem:[%s0 + $0xb0] sm:$0xff]
    %v65 = vld [vmem:[%s0 + $0xb8] sm:$0xff]
    %v66 = vld [vmem:[%s0 + $0xc0] sm:$0xff]
    %v67 = vld [vmem:[%s0 + $0xc8] sm:$0xff]
    %v68 = vld [vmem:[%s0 + $0xd0] sm:$0xff]
    %v69 = vld [vmem:[%s0 + $0xd8] sm:$0xff]
    %v70 = vld [vmem:[%s0 + $0xe0] sm:$0xff]
    %v71 = vld [vmem:[%s0 + $0xe8] sm:$0xff]
    %v72 = vld [vmem:[%s0 + $0xf0] sm:$0xff]
    %v73 = vld [vmem:[%s0 + $0xf8] sm:$0xff]
    %v74 = vpack.c.bf16 %v43, %v42
    %v75 = vpack.c.bf16 %v45, %v44
    %v76 = vpack.c.bf16 %v47, %v46
    %v77 = vpack.c.bf16 %v49, %v48
    %v78 = vpack.c.bf16 %v51, %v50
    %v79 = vpack.c.bf16 %v53, %v52
    %v80 = vpack.c.bf16 %v55, %v54
    %v81 = vpack.c.bf16 %v57, %v56
    %v82 = vpack.c.bf16 %v59, %v58
    %v83 = vpack.c.bf16 %v61, %v60
    %v84 = vpack.c.bf16 %v63, %v62
    %v85 = vpack.c.bf16 %v65, %v64
    %v86 = vpack.c.bf16 %v67, %v66
    %v87 = vpack.c.bf16 %v69, %v68
    %v88 = vpack.c.bf16 %v71, %v70
    %v89 = vpack.c.bf16 %v73, %v72
    %v90 = vld [vmem:[#allocation2] sm:$0xff]
    %v91 = vld [vmem:[#allocation2 + $0x8] sm:$0xff]
    %v92 = vld [vmem:[#allocation2 + $0x10] sm:$0xff]
    %v93 = vld [vmem:[#allocation2 + $0x18] sm:$0xff]
    %v94 = vld [vmem:[#allocation2 + $0x20] sm:$0xff]
    %v95 = vld [vmem:[#allocation2 + $0x28] sm:$0xff]
    %v96 = vld [vmem:[#allocation2 + $0x30] sm:$0xff]
    %v97 = vld [vmem:[#allocation2 + $0x38] sm:$0xff]
    %v98 = vld [vmem:[%s2] sm:$0x3]
    %v100 = vlaneseq
    %v101 = vshrl.u32 %v100, 7
    %v102 = vsub.s32 0, %v101
    %v103 = vrot.slane %v98, %v102
    %v104 = vlaneseq
    %v105 = vshrl.u32 %v104, 7
    %v106 = vsub.s32 1, %v105
    %v107 = vrot.slane %v98, %v106
    %v118 = vunpack.c.l.b16 %v90
    %v119 = vunpack.c.h.b16 %v90
    %v120 = vunpack.c.l.b16 %v91
    %v121 = vunpack.c.h.b16 %v91
    %v122 = vunpack.c.l.b16 %v92
    %v123 = vunpack.c.h.b16 %v92
    %v124 = vunpack.c.l.b16 %v93
    %v125 = vunpack.c.h.b16 %v93
    %v126 = vunpack.c.l.b16 %v94
    %v127 = vunpack.c.h.b16 %v94
    %v128 = vunpack.c.l.b16 %v95
    %v129 = vunpack.c.h.b16 %v95
    %v130 = vunpack.c.l.b16 %v96
    %v131 = vunpack.c.h.b16 %v96
    %v132 = vunpack.c.l.b16 %v97
    %v133 = vunpack.c.h.b16 %v97
    %v134 = vpack.c.b16 %v120, %v118
    %v135 = vpack.c.b16 %v121, %v119
    %v136 = vpack.c.b16 %v124, %v122
    %v137 = vpack.c.b16 %v125, %v123
    %v138 = vpack.c.b16 %v128, %v126
    %v139 = vpack.c.b16 %v129, %v127
    %v140 = vpack.c.b16 %v132, %v130
    %v141 = vpack.c.b16 %v133, %v131
    %vm150 = vcmask 523264
    %v152 = vsel %vm150, %v74, 0
    %v155 = vsel %vm150, %v75, 0
    %v158 = vsel %vm150, %v76, 0
    %v161 = vsel %vm150, %v77, 0
    %v164 = vsel %vm150, %v78, 0
    %v167 = vsel %vm150, %v79, 0
    %v170 = vsel %vm150, %v80, 0
    %v173 = vsel %vm150, %v81, 0
    %v176 = vsel %vm150, %v82, 0
    %v179 = vsel %vm150, %v83, 0
    %v182 = vsel %vm150, %v84, 0
    %v185 = vsel %vm150, %v85, 0
    %v188 = vsel %vm150, %v86, 0
    %v191 = vsel %vm150, %v87, 0
    %v194 = vsel %vm150, %v88, 0
    %v197 = vsel %vm150, %v89, 0
    %199 = vmatprep.subr.bf16.mxu0 0
    %200 = vmatpush1.bf16.msra.mxu0 0
    %201 = vmatprep.subr.bf16.mxu0 0
    %202 = vmatpush1.bf16.msra.mxu0 0
    %203 = vmatprep.subr.bf16.mxu0 0
    %204 = vmatpush1.bf16.msra.mxu0 0
    %205 = vmatprep.subr.bf16.mxu0 0
    %206 = vmatpush1.bf16.msra.mxu0 0
    %207 = vmatprep.subr.bf16.mxu0 %v141
    %208 = vmatpush1.bf16.msra.mxu0 %v140
    %209 = vmatprep.subr.bf16.mxu0 %v139
    %210 = vmatpush1.bf16.msra.mxu0 %v138
    %211 = vmatprep.subr.bf16.mxu0 %v137
    %212 = vmatpush1.bf16.msra.mxu0 %v136
    %213 = vmatprep.subr.bf16.mxu0 %v135
    %214 = vmatpush1.bf16.msra.mxu0 %v134
    %215 = vmatprep.subr.bf16.mxu0 0
    %216 = vmatpush2.bf16.msra.mxu0 0
    %217 = vmatprep.subr.bf16.mxu0 0
    %218 = vmatpush2.bf16.msra.mxu0 0
    %219 = vmatprep.subr.bf16.mxu0 0
    %220 = vmatpush2.bf16.msra.mxu0 0
    %221 = vmatprep.subr.bf16.mxu0 0
    %222 = vmatpush2.bf16.msra.mxu0 0
    %223 = vmatprep.subr.bf16.mxu0 0
    %224 = vmatpush2.bf16.msra.mxu0 0
    %225 = vmatprep.subr.bf16.mxu0 0
    %226 = vmatpush2.bf16.msra.mxu0 0
    %227 = vmatprep.subr.bf16.mxu0 0
    %228 = vmatpush2.bf16.msra.mxu0 0
    %229 = vmatprep.subr.bf16.mxu0 0
    %230 = vmatpush2.bf16.msra.mxu0 0
    %231 = vmatprep.mubr.bf16.mxu0 0
    %232 = vmatmul.mubr.bf16.gmra.mxu0 %v152
    %v233 = vpop.f32.mrf.mxu0
    %v234 = vadd.f32 %v103, %v233
    %v235 = vpop.f32.mrf.mxu0
    %v236 = vadd.f32 %v107, %v235
    %v237 = vpop.f32.mrf.mxu0
    %v238 = vadd.f32 %v103, %v237
    %v239 = vpop.f32.mrf.mxu0
    %v240 = vadd.f32 %v107, %v239
    %241 = vmatprep.mubr.bf16.mxu0 0
    %242 = vmatmul.mubr.bf16.gmra.mxu0 %v155
    %v243 = vpop.f32.mrf.mxu0
    %v244 = vadd.f32 %v103, %v243
    %v245 = vpop.f32.mrf.mxu0
    %v246 = vadd.f32 %v107, %v245
    %v247 = vpop.f32.mrf.mxu0
    %v248 = vadd.f32 %v103, %v247
    %v249 = vpop.f32.mrf.mxu0
    %v250 = vadd.f32 %v107, %v249
    %251 = vmatprep.mubr.bf16.mxu0 0
    %252 = vmatmul.mubr.bf16.gmra.mxu0 %v158
    %v253 = vpop.f32.mrf.mxu0
    %v254 = vadd.f32 %v103, %v253
    %v255 = vpop.f32.mrf.mxu0
    %v256 = vadd.f32 %v107, %v255
    %v257 = vpop.f32.mrf.mxu0
    %v258 = vadd.f32 %v103, %v257
    %v259 = vpop.f32.mrf.mxu0
    %v260 = vadd.f32 %v107, %v259
    %261 = vmatprep.mubr.bf16.mxu0 0
    %262 = vmatmul.mubr.bf16.gmra.mxu0 %v161
    %v263 = vpop.f32.mrf.mxu0
    %v264 = vadd.f32 %v103, %v263
    %v265 = vpop.f32.mrf.mxu0
    %v266 = vadd.f32 %v107, %v265
    %v267 = vpop.f32.mrf.mxu0
    %v268 = vadd.f32 %v103, %v267
    %v269 = vpop.f32.mrf.mxu0
    %v270 = vadd.f32 %v107, %v269
    %271 = vmatprep.mubr.bf16.mxu0 0
    %272 = vmatmul.mubr.bf16.gmra.mxu0 %v164
    %v273 = vpop.f32.mrf.mxu0
    %v274 = vadd.f32 %v103, %v273
    %v275 = vpop.f32.mrf.mxu0
    %v276 = vadd.f32 %v107, %v275
    %v277 = vpop.f32.mrf.mxu0
    %v278 = vadd.f32 %v103, %v277
    %v279 = vpop.f32.mrf.mxu0
    %v280 = vadd.f32 %v107, %v279
    %281 = vmatprep.mubr.bf16.mxu0 0
    %282 = vmatmul.mubr.bf16.gmra.mxu0 %v167
    %v283 = vpop.f32.mrf.mxu0
    %v284 = vadd.f32 %v103, %v283
    %v285 = vpop.f32.mrf.mxu0
    %v286 = vadd.f32 %v107, %v285
    %v287 = vpop.f32.mrf.mxu0
    %v288 = vadd.f32 %v103, %v287
    %v289 = vpop.f32.mrf.mxu0
    %v290 = vadd.f32 %v107, %v289
    %291 = vmatprep.mubr.bf16.mxu0 0
    %292 = vmatmul.mubr.bf16.gmra.mxu0 %v170
    %v293 = vpop.f32.mrf.mxu0
    %v294 = vadd.f32 %v103, %v293
    %v295 = vpop.f32.mrf.mxu0
    %v296 = vadd.f32 %v107, %v295
    %v297 = vpop.f32.mrf.mxu0
    %v298 = vadd.f32 %v103, %v297
    %v299 = vpop.f32.mrf.mxu0
    %v300 = vadd.f32 %v107, %v299
    %301 = vmatprep.mubr.bf16.mxu0 0
    %302 = vmatmul.mubr.bf16.gmra.mxu0 %v173
    %v303 = vpop.f32.mrf.mxu0
    %v304 = vadd.f32 %v103, %v303
    %v305 = vpop.f32.mrf.mxu0
    %v306 = vadd.f32 %v107, %v305
    %v307 = vpop.f32.mrf.mxu0
    %v308 = vadd.f32 %v103, %v307
    %v309 = vpop.f32.mrf.mxu0
    %v310 = vadd.f32 %v107, %v309
    %311 = vmatprep.mubr.bf16.mxu0 0
    %312 = vmatmul.mubr.bf16.gmra.mxu0 %v176
    %v313 = vpop.f32.mrf.mxu0
    %v314 = vadd.f32 %v103, %v313
    %v315 = vpop.f32.mrf.mxu0
    %v316 = vadd.f32 %v107, %v315
    %v317 = vpop.f32.mrf.mxu0
    %v318 = vadd.f32 %v103, %v317
    %v319 = vpop.f32.mrf.mxu0
    %v320 = vadd.f32 %v107, %v319
    %321 = vmatprep.mubr.bf16.mxu0 0
    %322 = vmatmul.mubr.bf16.gmra.mxu0 %v179
    %v323 = vpop.f32.mrf.mxu0
    %v324 = vadd.f32 %v103, %v323
    %v325 = vpop.f32.mrf.mxu0
    %v326 = vadd.f32 %v107, %v325
    %v327 = vpop.f32.mrf.mxu0
    %v328 = vadd.f32 %v103, %v327
    %v329 = vpop.f32.mrf.mxu0
    %v330 = vadd.f32 %v107, %v329
    %331 = vmatprep.mubr.bf16.mxu0 0
    %332 = vmatmul.mubr.bf16.gmra.mxu0 %v182
    %v333 = vpop.f32.mrf.mxu0
    %v334 = vadd.f32 %v103, %v333
    %v335 = vpop.f32.mrf.mxu0
    %v336 = vadd.f32 %v107, %v335
    %v337 = vpop.f32.mrf.mxu0
    %v338 = vadd.f32 %v103, %v337
    %v339 = vpop.f32.mrf.mxu0
    %v340 = vadd.f32 %v107, %v339
    %341 = vmatprep.mubr.bf16.mxu0 0
    %342 = vmatmul.mubr.bf16.gmra.mxu0 %v185
    %v343 = vpop.f32.mrf.mxu0
    %v344 = vadd.f32 %v103, %v343
    %v345 = vpop.f32.mrf.mxu0
    %v346 = vadd.f32 %v107, %v345
    %v347 = vpop.f32.mrf.mxu0
    %v348 = vadd.f32 %v103, %v347
    %v349 = vpop.f32.mrf.mxu0
    %v350 = vadd.f32 %v107, %v349
    %351 = vmatprep.mubr.bf16.mxu0 0
    %352 = vmatmul.mubr.bf16.gmra.mxu0 %v188
    %v353 = vpop.f32.mrf.mxu0
    %v354 = vadd.f32 %v103, %v353
    %v355 = vpop.f32.mrf.mxu0
    %v356 = vadd.f32 %v107, %v355
    %v357 = vpop.f32.mrf.mxu0
    %v358 = vadd.f32 %v103, %v357
    %v359 = vpop.f32.mrf.mxu0
    %v360 = vadd.f32 %v107, %v359
    %361 = vmatprep.mubr.bf16.mxu0 0
    %362 = vmatmul.mubr.bf16.gmra.mxu0 %v191
    %v363 = vpop.f32.mrf.mxu0
    %v364 = vadd.f32 %v103, %v363
    %v365 = vpop.f32.mrf.mxu0
    %v366 = vadd.f32 %v107, %v365
    %v367 = vpop.f32.mrf.mxu0
    %v368 = vadd.f32 %v103, %v367
    %v369 = vpop.f32.mrf.mxu0
    %v370 = vadd.f32 %v107, %v369
    %371 = vmatprep.mubr.bf16.mxu0 0
    %372 = vmatmul.mubr.bf16.gmra.mxu0 %v194
    %v373 = vpop.f32.mrf.mxu0
    %v374 = vadd.f32 %v103, %v373
    %v375 = vpop.f32.mrf.mxu0
    %v376 = vadd.f32 %v107, %v375
    %v377 = vpop.f32.mrf.mxu0
    %v378 = vadd.f32 %v103, %v377
    %v379 = vpop.f32.mrf.mxu0
    %v380 = vadd.f32 %v107, %v379
    %381 = vmatprep.mubr.bf16.mxu0 0
    %382 = vmatmul.mubr.bf16.gmra.mxu0 %v197
    %v383 = vpop.f32.mrf.mxu0
    %v384 = vadd.f32 %v103, %v383
    %v385 = vpop.f32.mrf.mxu0
    %v386 = vadd.f32 %v107, %v385
    %v387 = vpop.f32.mrf.mxu0
    %v388 = vadd.f32 %v103, %v387
    %v389 = vpop.f32.mrf.mxu0
    %v390 = vadd.f32 %v107, %v389
    %391 = vdwg.mxu0
    %v392 = vmax.f32 %v234, 0.0
    %v393 = vmax.f32 %v236, 0.0
    %v394 = vmax.f32 %v238, 0.0
    %v395 = vmax.f32 %v240, 0.0
    %v396 = vmax.f32 %v244, 0.0
    %v397 = vmax.f32 %v246, 0.0
    %v398 = vmax.f32 %v248, 0.0
    %v399 = vmax.f32 %v250, 0.0
    %v400 = vmax.f32 %v254, 0.0
    %v401 = vmax.f32 %v256, 0.0
    %v402 = vmax.f32 %v258, 0.0
    %v403 = vmax.f32 %v260, 0.0
    %v404 = vmax.f32 %v264, 0.0
    %v405 = vmax.f32 %v266, 0.0
    %v406 = vmax.f32 %v268, 0.0
    %v407 = vmax.f32 %v270, 0.0
    %v408 = vmax.f32 %v274, 0.0
    %v409 = vmax.f32 %v276, 0.0
    %v410 = vmax.f32 %v278, 0.0
    %v411 = vmax.f32 %v280, 0.0
    %v412 = vmax.f32 %v284, 0.0
    %v413 = vmax.f32 %v286, 0.0
    %v414 = vmax.f32 %v288, 0.0
    %v415 = vmax.f32 %v290, 0.0
    %v416 = vmax.f32 %v294, 0.0
    %v417 = vmax.f32 %v296, 0.0
    %v418 = vmax.f32 %v298, 0.0
    %v419 = vmax.f32 %v300, 0.0
    %v420 = vmax.f32 %v304, 0.0
    %v421 = vmax.f32 %v306, 0.0
    %v422 = vmax.f32 %v308, 0.0
    %v423 = vmax.f32 %v310, 0.0
    %v424 = vmax.f32 %v314, 0.0
    %v425 = vmax.f32 %v316, 0.0
    %v426 = vmax.f32 %v318, 0.0
    %v427 = vmax.f32 %v320, 0.0
    %v428 = vmax.f32 %v324, 0.0
    %v429 = vmax.f32 %v326, 0.0
    %v430 = vmax.f32 %v328, 0.0
    %v431 = vmax.f32 %v330, 0.0
    %v432 = vmax.f32 %v334, 0.0
    %v433 = vmax.f32 %v336, 0.0
    %v434 = vmax.f32 %v338, 0.0
    %v435 = vmax.f32 %v340, 0.0
    %v436 = vmax.f32 %v344, 0.0
    %v437 = vmax.f32 %v346, 0.0
    %v438 = vmax.f32 %v348, 0.0
    %v439 = vmax.f32 %v350, 0.0
    %v440 = vmax.f32 %v354, 0.0
    %v441 = vmax.f32 %v356, 0.0
    %v442 = vmax.f32 %v358, 0.0
    %v443 = vmax.f32 %v360, 0.0
    %v444 = vmax.f32 %v364, 0.0
    %v445 = vmax.f32 %v366, 0.0
    %v446 = vmax.f32 %v368, 0.0
    %v447 = vmax.f32 %v370, 0.0
    %v448 = vmax.f32 %v374, 0.0
    %v449 = vmax.f32 %v376, 0.0
    %v450 = vmax.f32 %v378, 0.0
    %v451 = vmax.f32 %v380, 0.0
    %v452 = vmax.f32 %v384, 0.0
    %v453 = vmax.f32 %v386, 0.0
    %v454 = vmax.f32 %v388, 0.0
    %v455 = vmax.f32 %v390, 0.0
    %v456 = vpack.c.bf16 %v394, %v392
    %v457 = vpack.c.bf16 %v395, %v393
    %v458 = vpack.c.bf16 %v398, %v396
    %v459 = vpack.c.bf16 %v399, %v397
    %v460 = vpack.c.bf16 %v402, %v400
    %v461 = vpack.c.bf16 %v403, %v401
    %v462 = vpack.c.bf16 %v406, %v404
    %v463 = vpack.c.bf16 %v407, %v405
    %v464 = vpack.c.bf16 %v410, %v408
    %v465 = vpack.c.bf16 %v411, %v409
    %v466 = vpack.c.bf16 %v414, %v412
    %v467 = vpack.c.bf16 %v415, %v413
    %v468 = vpack.c.bf16 %v418, %v416
    %v469 = vpack.c.bf16 %v419, %v417
    %v470 = vpack.c.bf16 %v422, %v420
    %v471 = vpack.c.bf16 %v423, %v421
    %v472 = vpack.c.bf16 %v426, %v424
    %v473 = vpack.c.bf16 %v427, %v425
    %v474 = vpack.c.bf16 %v430, %v428
    %v475 = vpack.c.bf16 %v431, %v429
    %v476 = vpack.c.bf16 %v434, %v432
    %v477 = vpack.c.bf16 %v435, %v433
    %v478 = vpack.c.bf16 %v438, %v436
    %v479 = vpack.c.bf16 %v439, %v437
    %v480 = vpack.c.bf16 %v442, %v440
    %v481 = vpack.c.bf16 %v443, %v441
    %v482 = vpack.c.bf16 %v446, %v444
    %v483 = vpack.c.bf16 %v447, %v445
    %v484 = vpack.c.bf16 %v450, %v448
    %v485 = vpack.c.bf16 %v451, %v449
    %v486 = vpack.c.bf16 %v454, %v452
    %v487 = vpack.c.bf16 %v455, %v453
    %v488 = vld [vmem:[%s3] sm:$0xff]
    %v489 = vld [vmem:[%s3 + $0x8] sm:$0xff]
    %v490 = vld [vmem:[%s3 + $0x10] sm:$0xff]
    %v491 = vld [vmem:[%s3 + $0x18] sm:$0xff]
    %v492 = vld [vmem:[%s3 + $0x20] sm:$0xff]
    %v493 = vld [vmem:[%s3 + $0x28] sm:$0xff]
    %v494 = vld [vmem:[%s3 + $0x30] sm:$0xff]
    %v495 = vld [vmem:[%s3 + $0x38] sm:$0xff]
    %v496 = vld [vmem:[%s3 + $0x40] sm:$0xff]
    %v497 = vld [vmem:[%s3 + $0x48] sm:$0xff]
    %v498 = vld [vmem:[%s3 + $0x50] sm:$0xff]
    %v499 = vld [vmem:[%s3 + $0x58] sm:$0xff]
    %v500 = vld [vmem:[%s3 + $0x60] sm:$0xff]
    %v501 = vld [vmem:[%s3 + $0x68] sm:$0xff]
    %v502 = vld [vmem:[%s3 + $0x70] sm:$0xff]
    %v503 = vld [vmem:[%s3 + $0x78] sm:$0xff]
    %v504 = vld [vmem:[%s3 + $0x80] sm:$0xff]
    %v505 = vld [vmem:[%s3 + $0x88] sm:$0xff]
    %v506 = vld [vmem:[%s3 + $0x90] sm:$0xff]
    %v507 = vld [vmem:[%s3 + $0x98] sm:$0xff]
    %v508 = vld [vmem:[%s3 + $0xa0] sm:$0xff]
    %v509 = vld [vmem:[%s3 + $0xa8] sm:$0xff]
    %v510 = vld [vmem:[%s3 + $0xb0] sm:$0xff]
    %v511 = vld [vmem:[%s3 + $0xb8] sm:$0xff]
    %v512 = vld [vmem:[%s3 + $0xc0] sm:$0xff]
    %v513 = vld [vmem:[%s3 + $0xc8] sm:$0xff]
    %v514 = vld [vmem:[%s3 + $0xd0] sm:$0xff]
    %v515 = vld [vmem:[%s3 + $0xd8] sm:$0xff]
    %v516 = vld [vmem:[%s3 + $0xe0] sm:$0xff]
    %v517 = vld [vmem:[%s3 + $0xe8] sm:$0xff]
    %v518 = vld [vmem:[%s3 + $0xf0] sm:$0xff]
    %v519 = vld [vmem:[%s3 + $0xf8] sm:$0xff]
    %v520 = vld [vmem:[%s4] sm:$0x3]
    %v522 = vlaneseq
    %v523 = vshrl.u32 %v522, 7
    %v524 = vsub.s32 0, %v523
    %v525 = vrot.slane %v520, %v524
    %v526 = vlaneseq
    %v527 = vshrl.u32 %v526, 7
    %v528 = vsub.s32 1, %v527
    %v529 = vrot.slane %v520, %v528
    %v564 = vunpack.c.l.b16 %v488
    %v565 = vunpack.c.h.b16 %v488
    %v566 = vunpack.c.l.b16 %v489
    %v567 = vunpack.c.h.b16 %v489
    %v568 = vunpack.c.l.b16 %v490
    %v569 = vunpack.c.h.b16 %v490
    %v570 = vunpack.c.l.b16 %v491
    %v571 = vunpack.c.h.b16 %v491
    %v572 = vunpack.c.l.b16 %v492
    %v573 = vunpack.c.h.b16 %v492
    %v574 = vunpack.c.l.b16 %v493
    %v575 = vunpack.c.h.b16 %v493
    %v576 = vunpack.c.l.b16 %v494
    %v577 = vunpack.c.h.b16 %v494
    %v578 = vunpack.c.l.b16 %v495
    %v579 = vunpack.c.h.b16 %v495
    %v580 = vunpack.c.l.b16 %v496
    %v581 = vunpack.c.h.b16 %v496
    %v582 = vunpack.c.l.b16 %v497
    %v583 = vunpack.c.h.b16 %v497
    %v584 = vunpack.c.l.b16 %v498
    %v585 = vunpack.c.h.b16 %v498
    %v586 = vunpack.c.l.b16 %v499
    %v587 = vunpack.c.h.b16 %v499
    %v588 = vunpack.c.l.b16 %v500
    %v589 = vunpack.c.h.b16 %v500
    %v590 = vunpack.c.l.b16 %v501
    %v591 = vunpack.c.h.b16 %v501
    %v592 = vunpack.c.l.b16 %v502
    %v593 = vunpack.c.h.b16 %v502
    %v594 = vunpack.c.l.b16 %v503
    %v595 = vunpack.c.h.b16 %v503
    %v596 = vunpack.c.l.b16 %v504
    %v597 = vunpack.c.h.b16 %v504
    %v598 = vunpack.c.l.b16 %v505
    %v599 = vunpack.c.h.b16 %v505
    %v600 = vunpack.c.l.b16 %v506
    %v601 = vunpack.c.h.b16 %v506
    %v602 = vunpack.c.l.b16 %v507
    %v603 = vunpack.c.h.b16 %v507
    %v604 = vunpack.c.l.b16 %v508
    %v605 = vunpack.c.h.b16 %v508
    %v606 = vunpack.c.l.b16 %v509
    %v607 = vunpack.c.h.b16 %v509
    %v608 = vunpack.c.l.b16 %v510
    %v609 = vunpack.c.h.b16 %v510
    %v610 = vunpack.c.l.b16 %v511
    %v611 = vunpack.c.h.b16 %v511
    %v612 = vunpack.c.l.b16 %v512
    %v613 = vunpack.c.h.b16 %v512
    %v614 = vunpack.c.l.b16 %v513
    %v615 = vunpack.c.h.b16 %v513
    %v616 = vunpack.c.l.b16 %v514
    %v617 = vunpack.c.h.b16 %v514
    %v618 = vunpack.c.l.b16 %v515
    %v619 = vunpack.c.h.b16 %v515
    %v620 = vunpack.c.l.b16 %v516
    %v621 = vunpack.c.h.b16 %v516
    %v622 = vunpack.c.l.b16 %v517
    %v623 = vunpack.c.h.b16 %v517
    %v624 = vunpack.c.l.b16 %v518
    %v625 = vunpack.c.h.b16 %v518
    %v626 = vunpack.c.l.b16 %v519
    %v627 = vunpack.c.h.b16 %v519
    %v628 = vpack.c.b16 %v566, %v564
    %v629 = vpack.c.b16 %v567, %v565
    %v630 = vpack.c.b16 %v570, %v568
    %v631 = vpack.c.b16 %v571, %v569
    %v632 = vpack.c.b16 %v574, %v572
    %v633 = vpack.c.b16 %v575, %v573
    %v634 = vpack.c.b16 %v578, %v576
    %v635 = vpack.c.b16 %v579, %v577
    %v636 = vpack.c.b16 %v582, %v580
    %v637 = vpack.c.b16 %v583, %v581
    %v638 = vpack.c.b16 %v586, %v584
    %v639 = vpack.c.b16 %v587, %v585
    %v640 = vpack.c.b16 %v590, %v588
    %v641 = vpack.c.b16 %v591, %v589
    %v642 = vpack.c.b16 %v594, %v592
    %v643 = vpack.c.b16 %v595, %v593
    %v644 = vpack.c.b16 %v598, %v596
    %v645 = vpack.c.b16 %v599, %v597
    %v646 = vpack.c.b16 %v602, %v600
    %v647 = vpack.c.b16 %v603, %v601
    %v648 = vpack.c.b16 %v606, %v604
    %v649 = vpack.c.b16 %v607, %v605
    %v650 = vpack.c.b16 %v610, %v608
    %v651 = vpack.c.b16 %v611, %v609
    %v652 = vpack.c.b16 %v614, %v612
    %v653 = vpack.c.b16 %v615, %v613
    %v654 = vpack.c.b16 %v618, %v616
    %v655 = vpack.c.b16 %v619, %v617
    %v656 = vpack.c.b16 %v622, %v620
    %v657 = vpack.c.b16 %v623, %v621
    %v658 = vpack.c.b16 %v626, %v624
    %v659 = vpack.c.b16 %v627, %v625
    %692 = vmatprep.subr.bf16.mxu0 %v643
    %693 = vmatpush1.bf16.msra.mxu0 %v642
    %694 = vmatprep.subr.bf16.mxu0 %v641
    %695 = vmatpush1.bf16.msra.mxu0 %v640
    %696 = vmatprep.subr.bf16.mxu0 %v639
    %697 = vmatpush1.bf16.msra.mxu0 %v638
    %698 = vmatprep.subr.bf16.mxu0 %v637
    %699 = vmatpush1.bf16.msra.mxu0 %v636
    %700 = vmatprep.subr.bf16.mxu0 %v635
    %701 = vmatpush1.bf16.msra.mxu0 %v634
    %702 = vmatprep.subr.bf16.mxu0 %v633
    %703 = vmatpush1.bf16.msra.mxu0 %v632
    %704 = vmatprep.subr.bf16.mxu0 %v631
    %705 = vmatpush1.bf16.msra.mxu0 %v630
    %706 = vmatprep.subr.bf16.mxu0 %v629
    %707 = vmatpush1.bf16.msra.mxu0 %v628
    %708 = vmatprep.subr.bf16.mxu0 %v659
    %709 = vmatpush2.bf16.msra.mxu0 %v658
    %710 = vmatprep.subr.bf16.mxu0 %v657
    %711 = vmatpush2.bf16.msra.mxu0 %v656
    %712 = vmatprep.subr.bf16.mxu0 %v655
    %713 = vmatpush2.bf16.msra.mxu0 %v654
    %714 = vmatprep.subr.bf16.mxu0 %v653
    %715 = vmatpush2.bf16.msra.mxu0 %v652
    %716 = vmatprep.subr.bf16.mxu0 %v651
    %717 = vmatpush2.bf16.msra.mxu0 %v650
    %718 = vmatprep.subr.bf16.mxu0 %v649
    %719 = vmatpush2.bf16.msra.mxu0 %v648
    %720 = vmatprep.subr.bf16.mxu0 %v647
    %721 = vmatpush2.bf16.msra.mxu0 %v646
    %722 = vmatprep.subr.bf16.mxu0 %v645
    %723 = vmatpush2.bf16.msra.mxu0 %v644
    %724 = vmatprep.mubr.bf16.mxu0 %v457
    %725 = vmatmul.mubr.bf16.gmra.mxu0 %v456
    %v726 = vpop.f32.mrf.mxu0
    %v727 = vadd.f32 %v525, %v726
    %v728 = vpop.f32.mrf.mxu0
    %v729 = vadd.f32 %v529, %v728
    %v730 = vpop.f32.mrf.mxu0
    %v731 = vadd.f32 %v525, %v730
    %v732 = vpop.f32.mrf.mxu0
    %v733 = vadd.f32 %v529, %v732
    %734 = vmatprep.mubr.bf16.mxu0 %v459
    %735 = vmatmul.mubr.bf16.gmra.mxu0 %v458
    %v736 = vpop.f32.mrf.mxu0
    %v737 = vadd.f32 %v525, %v736
    %v738 = vpop.f32.mrf.mxu0
    %v739 = vadd.f32 %v529, %v738
    %v740 = vpop.f32.mrf.mxu0
    %v741 = vadd.f32 %v525, %v740
    %v742 = vpop.f32.mrf.mxu0
    %v743 = vadd.f32 %v529, %v742
    %744 = vmatprep.mubr.bf16.mxu0 %v461
    %745 = vmatmul.mubr.bf16.gmra.mxu0 %v460
    %v746 = vpop.f32.mrf.mxu0
    %v747 = vadd.f32 %v525, %v746
    %v748 = vpop.f32.mrf.mxu0
    %v749 = vadd.f32 %v529, %v748
    %v750 = vpop.f32.mrf.mxu0
    %v751 = vadd.f32 %v525, %v750
    %v752 = vpop.f32.mrf.mxu0
    %v753 = vadd.f32 %v529, %v752
    %754 = vmatprep.mubr.bf16.mxu0 %v463
    %755 = vmatmul.mubr.bf16.gmra.mxu0 %v462
    %v756 = vpop.f32.mrf.mxu0
    %v757 = vadd.f32 %v525, %v756
    %v758 = vpop.f32.mrf.mxu0
    %v759 = vadd.f32 %v529, %v758
    %v760 = vpop.f32.mrf.mxu0
    %v761 = vadd.f32 %v525, %v760
    %v762 = vpop.f32.mrf.mxu0
    %v763 = vadd.f32 %v529, %v762
    %764 = vmatprep.mubr.bf16.mxu0 %v465
    %765 = vmatmul.mubr.bf16.gmra.mxu0 %v464
    %v766 = vpop.f32.mrf.mxu0
    %v767 = vadd.f32 %v525, %v766
    %v768 = vpop.f32.mrf.mxu0
    %v769 = vadd.f32 %v529, %v768
    %v770 = vpop.f32.mrf.mxu0
    %v771 = vadd.f32 %v525, %v770
    %v772 = vpop.f32.mrf.mxu0
    %v773 = vadd.f32 %v529, %v772
    %774 = vmatprep.mubr.bf16.mxu0 %v467
    %775 = vmatmul.mubr.bf16.gmra.mxu0 %v466
    %v776 = vpop.f32.mrf.mxu0
    %v777 = vadd.f32 %v525, %v776
    %v778 = vpop.f32.mrf.mxu0
    %v779 = vadd.f32 %v529, %v778
    %v780 = vpop.f32.mrf.mxu0
    %v781 = vadd.f32 %v525, %v780
    %v782 = vpop.f32.mrf.mxu0
    %v783 = vadd.f32 %v529, %v782
    %784 = vmatprep.mubr.bf16.mxu0 %v469
    %785 = vmatmul.mubr.bf16.gmra.mxu0 %v468
    %v786 = vpop.f32.mrf.mxu0
    %v787 = vadd.f32 %v525, %v786
    %v788 = vpop.f32.mrf.mxu0
    %v789 = vadd.f32 %v529, %v788
    %v790 = vpop.f32.mrf.mxu0
    %v791 = vadd.f32 %v525, %v790
    %v792 = vpop.f32.mrf.mxu0
    %v793 = vadd.f32 %v529, %v792
    %794 = vmatprep.mubr.bf16.mxu0 %v471
    %795 = vmatmul.mubr.bf16.gmra.mxu0 %v470
    %v796 = vpop.f32.mrf.mxu0
    %v797 = vadd.f32 %v525, %v796
    %v798 = vpop.f32.mrf.mxu0
    %v799 = vadd.f32 %v529, %v798
    %v800 = vpop.f32.mrf.mxu0
    %v801 = vadd.f32 %v525, %v800
    %v802 = vpop.f32.mrf.mxu0
    %v803 = vadd.f32 %v529, %v802
    %804 = vmatprep.mubr.bf16.mxu0 %v473
    %805 = vmatmul.mubr.bf16.gmra.mxu0 %v472
    %v806 = vpop.f32.mrf.mxu0
    %v807 = vadd.f32 %v525, %v806
    %v808 = vpop.f32.mrf.mxu0
    %v809 = vadd.f32 %v529, %v808
    %v810 = vpop.f32.mrf.mxu0
    %v811 = vadd.f32 %v525, %v810
    %v812 = vpop.f32.mrf.mxu0
    %v813 = vadd.f32 %v529, %v812
    %814 = vmatprep.mubr.bf16.mxu0 %v475
    %815 = vmatmul.mubr.bf16.gmra.mxu0 %v474
    %v816 = vpop.f32.mrf.mxu0
    %v817 = vadd.f32 %v525, %v816
    %v818 = vpop.f32.mrf.mxu0
    %v819 = vadd.f32 %v529, %v818
    %v820 = vpop.f32.mrf.mxu0
    %v821 = vadd.f32 %v525, %v820
    %v822 = vpop.f32.mrf.mxu0
    %v823 = vadd.f32 %v529, %v822
    %824 = vmatprep.mubr.bf16.mxu0 %v477
    %825 = vmatmul.mubr.bf16.gmra.mxu0 %v476
    %v826 = vpop.f32.mrf.mxu0
    %v827 = vadd.f32 %v525, %v826
    %v828 = vpop.f32.mrf.mxu0
    %v829 = vadd.f32 %v529, %v828
    %v830 = vpop.f32.mrf.mxu0
    %v831 = vadd.f32 %v525, %v830
    %v832 = vpop.f32.mrf.mxu0
    %v833 = vadd.f32 %v529, %v832
    %834 = vmatprep.mubr.bf16.mxu0 %v479
    %835 = vmatmul.mubr.bf16.gmra.mxu0 %v478
    %v836 = vpop.f32.mrf.mxu0
    %v837 = vadd.f32 %v525, %v836
    %v838 = vpop.f32.mrf.mxu0
    %v839 = vadd.f32 %v529, %v838
    %v840 = vpop.f32.mrf.mxu0
    %v841 = vadd.f32 %v525, %v840
    %v842 = vpop.f32.mrf.mxu0
    %v843 = vadd.f32 %v529, %v842
    %844 = vmatprep.mubr.bf16.mxu0 %v481
    %845 = vmatmul.mubr.bf16.gmra.mxu0 %v480
    %v846 = vpop.f32.mrf.mxu0
    %v847 = vadd.f32 %v525, %v846
    %v848 = vpop.f32.mrf.mxu0
    %v849 = vadd.f32 %v529, %v848
    %v850 = vpop.f32.mrf.mxu0
    %v851 = vadd.f32 %v525, %v850
    %v852 = vpop.f32.mrf.mxu0
    %v853 = vadd.f32 %v529, %v852
    %854 = vmatprep.mubr.bf16.mxu0 %v483
    %855 = vmatmul.mubr.bf16.gmra.mxu0 %v482
    %v856 = vpop.f32.mrf.mxu0
    %v857 = vadd.f32 %v525, %v856
    %v858 = vpop.f32.mrf.mxu0
    %v859 = vadd.f32 %v529, %v858
    %v860 = vpop.f32.mrf.mxu0
    %v861 = vadd.f32 %v525, %v860
    %v862 = vpop.f32.mrf.mxu0
    %v863 = vadd.f32 %v529, %v862
    %864 = vmatprep.mubr.bf16.mxu0 %v485
    %865 = vmatmul.mubr.bf16.gmra.mxu0 %v484
    %v866 = vpop.f32.mrf.mxu0
    %v867 = vadd.f32 %v525, %v866
    %v868 = vpop.f32.mrf.mxu0
    %v869 = vadd.f32 %v529, %v868
    %v870 = vpop.f32.mrf.mxu0
    %v871 = vadd.f32 %v525, %v870
    %v872 = vpop.f32.mrf.mxu0
    %v873 = vadd.f32 %v529, %v872
    %874 = vmatprep.mubr.bf16.mxu0 %v487
    %875 = vmatmul.mubr.bf16.gmra.mxu0 %v486
    %v876 = vpop.f32.mrf.mxu0
    %v877 = vadd.f32 %v525, %v876
    %v878 = vpop.f32.mrf.mxu0
    %v879 = vadd.f32 %v529, %v878
    %v880 = vpop.f32.mrf.mxu0
    %v881 = vadd.f32 %v525, %v880
    %v882 = vpop.f32.mrf.mxu0
    %v883 = vadd.f32 %v529, %v882
    %884 = vdwg.mxu0
    %v885 = vmax.f32 %v727, 0.0
    %v886 = vmax.f32 %v729, 0.0
    %v887 = vmax.f32 %v731, 0.0
    %v888 = vmax.f32 %v733, 0.0
    %v889 = vmax.f32 %v737, 0.0
    %v890 = vmax.f32 %v739, 0.0
    %v891 = vmax.f32 %v741, 0.0
    %v892 = vmax.f32 %v743, 0.0
    %v893 = vmax.f32 %v747, 0.0
    %v894 = vmax.f32 %v749, 0.0
    %v895 = vmax.f32 %v751, 0.0
    %v896 = vmax.f32 %v753, 0.0
    %v897 = vmax.f32 %v757, 0.0
    %v898 = vmax.f32 %v759, 0.0
    %v899 = vmax.f32 %v761, 0.0
    %v900 = vmax.f32 %v763, 0.0
    %v901 = vmax.f32 %v767, 0.0
    %v902 = vmax.f32 %v769, 0.0
    %v903 = vmax.f32 %v771, 0.0
    %v904 = vmax.f32 %v773, 0.0
    %v905 = vmax.f32 %v777, 0.0
    %v906 = vmax.f32 %v779, 0.0
    %v907 = vmax.f32 %v781, 0.0
    %v908 = vmax.f32 %v783, 0.0
    %v909 = vmax.f32 %v787, 0.0
    %v910 = vmax.f32 %v789, 0.0
    %v911 = vmax.f32 %v791, 0.0
    %v912 = vmax.f32 %v793, 0.0
    %v913 = vmax.f32 %v797, 0.0
    %v914 = vmax.f32 %v799, 0.0
    %v915 = vmax.f32 %v801, 0.0
    %v916 = vmax.f32 %v803, 0.0
    %v917 = vmax.f32 %v807, 0.0
    %v918 = vmax.f32 %v809, 0.0
    %v919 = vmax.f32 %v811, 0.0
    %v920 = vmax.f32 %v813, 0.0
    %v921 = vmax.f32 %v817, 0.0
    %v922 = vmax.f32 %v819, 0.0
    %v923 = vmax.f32 %v821, 0.0
    %v924 = vmax.f32 %v823, 0.0
    %v925 = vmax.f32 %v827, 0.0
    %v926 = vmax.f32 %v829, 0.0
    %v927 = vmax.f32 %v831, 0.0
    %v928 = vmax.f32 %v833, 0.0
    %v929 = vmax.f32 %v837, 0.0
    %v930 = vmax.f32 %v839, 0.0
    %v931 = vmax.f32 %v841, 0.0
    %v932 = vmax.f32 %v843, 0.0
    %v933 = vmax.f32 %v847, 0.0
    %v934 = vmax.f32 %v849, 0.0
    %v935 = vmax.f32 %v851, 0.0
    %v936 = vmax.f32 %v853, 0.0
    %v937 = vmax.f32 %v857, 0.0
    %v938 = vmax.f32 %v859, 0.0
    %v939 = vmax.f32 %v861, 0.0
    %v940 = vmax.f32 %v863, 0.0
    %v941 = vmax.f32 %v867, 0.0
    %v942 = vmax.f32 %v869, 0.0
    %v943 = vmax.f32 %v871, 0.0
    %v944 = vmax.f32 %v873, 0.0
    %v945 = vmax.f32 %v877, 0.0
    %v946 = vmax.f32 %v879, 0.0
    %v947 = vmax.f32 %v881, 0.0
    %v948 = vmax.f32 %v883, 0.0
    %v949 = vpack.c.bf16 %v887, %v885
    %v950 = vpack.c.bf16 %v888, %v886
    %v951 = vpack.c.bf16 %v891, %v889
    %v952 = vpack.c.bf16 %v892, %v890
    %v953 = vpack.c.bf16 %v895, %v893
    %v954 = vpack.c.bf16 %v896, %v894
    %v955 = vpack.c.bf16 %v899, %v897
    %v956 = vpack.c.bf16 %v900, %v898
    %v957 = vpack.c.bf16 %v903, %v901
    %v958 = vpack.c.bf16 %v904, %v902
    %v959 = vpack.c.bf16 %v907, %v905
    %v960 = vpack.c.bf16 %v908, %v906
    %v961 = vpack.c.bf16 %v911, %v909
    %v962 = vpack.c.bf16 %v912, %v910
    %v963 = vpack.c.bf16 %v915, %v913
    %v964 = vpack.c.bf16 %v916, %v914
    %v965 = vpack.c.bf16 %v919, %v917
    %v966 = vpack.c.bf16 %v920, %v918
    %v967 = vpack.c.bf16 %v923, %v921
    %v968 = vpack.c.bf16 %v924, %v922
    %v969 = vpack.c.bf16 %v927, %v925
    %v970 = vpack.c.bf16 %v928, %v926
    %v971 = vpack.c.bf16 %v931, %v929
    %v972 = vpack.c.bf16 %v932, %v930
    %v973 = vpack.c.bf16 %v935, %v933
    %v974 = vpack.c.bf16 %v936, %v934
    %v975 = vpack.c.bf16 %v939, %v937
    %v976 = vpack.c.bf16 %v940, %v938
    %v977 = vpack.c.bf16 %v943, %v941
    %v978 = vpack.c.bf16 %v944, %v942
    %v979 = vpack.c.bf16 %v947, %v945
    %v980 = vpack.c.bf16 %v948, %v946
    %v981 = vld [vmem:[%s5] sm:$0xf]
    %v982 = vld [vmem:[%s5 + $0x4] sm:$0xf]
    %v983 = vld [vmem:[%s5 + $0x8] sm:$0xf]
    %v984 = vld [vmem:[%s5 + $0xc] sm:$0xf]
    %v985 = vld [vmem:[%s5 + $0x10] sm:$0xf]
    %v986 = vld [vmem:[%s5 + $0x14] sm:$0xf]
    %v987 = vld [vmem:[%s5 + $0x18] sm:$0xf]
    %v988 = vld [vmem:[%s5 + $0x1c] sm:$0xf]
    %v989 = vld [vmem:[%s5 + $0x20] sm:$0xf]
    %v990 = vld [vmem:[%s5 + $0x24] sm:$0xf]
    %v991 = vld [vmem:[%s5 + $0x28] sm:$0xf]
    %v992 = vld [vmem:[%s5 + $0x2c] sm:$0xf]
    %v993 = vld [vmem:[%s5 + $0x30] sm:$0xf]
    %v994 = vld [vmem:[%s5 + $0x34] sm:$0xf]
    %v995 = vld [vmem:[%s5 + $0x38] sm:$0xf]
    %v996 = vld [vmem:[%s5 + $0x3c] sm:$0xf]
    %v997 = vld [vmem:[%s5 + $0x40] sm:$0xf]
    %v998 = vld [vmem:[%s5 + $0x44] sm:$0xf]
    %v999 = vld [vmem:[%s5 + $0x48] sm:$0xf]
    %v1000 = vld [vmem:[%s5 + $0x4c] sm:$0xf]
    %v1001 = vld [vmem:[%s5 + $0x50] sm:$0xf]
    %v1002 = vld [vmem:[%s5 + $0x54] sm:$0xf]
    %v1003 = vld [vmem:[%s5 + $0x58] sm:$0xf]
    %v1004 = vld [vmem:[%s5 + $0x5c] sm:$0xf]
    %v1005 = vld [vmem:[%s5 + $0x60] sm:$0xf]
    %v1006 = vld [vmem:[%s5 + $0x64] sm:$0xf]
    %v1007 = vld [vmem:[%s5 + $0x68] sm:$0xf]
    %v1008 = vld [vmem:[%s5 + $0x6c] sm:$0xf]
    %v1009 = vld [vmem:[%s5 + $0x70] sm:$0xf]
    %v1010 = vld [vmem:[%s5 + $0x74] sm:$0xf]
    %v1011 = vld [vmem:[%s5 + $0x78] sm:$0xf]
    %v1012 = vld [vmem:[%s5 + $0x7c] sm:$0xf]
    %v1013 = vld [vmem:[%s6] sm:$0x1]
    %v1015 = vlaneseq
    %v1016 = vshrl.u32 %v1015, 7
    %v1017 = vsub.s32 0, %v1016
    %v1018 = vrot.slane %v1013, %v1017
    %v1052 = vunpack.c.l.b16 %v981
    %v1053 = vunpack.c.l.b16 %v982
    %v1054 = vunpack.c.l.b16 %v983
    %v1055 = vunpack.c.l.b16 %v984
    %v1056 = vunpack.c.l.b16 %v985
    %v1057 = vunpack.c.l.b16 %v986
    %v1058 = vunpack.c.l.b16 %v987
    %v1059 = vunpack.c.l.b16 %v988
    %v1060 = vunpack.c.l.b16 %v989
    %v1061 = vunpack.c.l.b16 %v990
    %v1062 = vunpack.c.l.b16 %v991
    %v1063 = vunpack.c.l.b16 %v992
    %v1064 = vunpack.c.l.b16 %v993
    %v1065 = vunpack.c.l.b16 %v994
    %v1066 = vunpack.c.l.b16 %v995
    %v1067 = vunpack.c.l.b16 %v996
    %v1068 = vunpack.c.l.b16 %v997
    %v1069 = vunpack.c.l.b16 %v998
    %v1070 = vunpack.c.l.b16 %v999
    %v1071 = vunpack.c.l.b16 %v1000
    %v1072 = vunpack.c.l.b16 %v1001
    %v1073 = vunpack.c.l.b16 %v1002
    %v1074 = vunpack.c.l.b16 %v1003
    %v1075 = vunpack.c.l.b16 %v1004
    %v1076 = vunpack.c.l.b16 %v1005
    %v1077 = vunpack.c.l.b16 %v1006
    %v1078 = vunpack.c.l.b16 %v1007
    %v1079 = vunpack.c.l.b16 %v1008
    %v1080 = vunpack.c.l.b16 %v1009
    %v1081 = vunpack.c.l.b16 %v1010
    %v1082 = vunpack.c.l.b16 %v1011
    %v1083 = vunpack.c.l.b16 %v1012
    %v1084 = vpack.c.b16 %v1053, %v1052
    %v1085 = vpack.c.b16 %v1055, %v1054
    %v1086 = vpack.c.b16 %v1057, %v1056
    %v1087 = vpack.c.b16 %v1059, %v1058
    %v1088 = vpack.c.b16 %v1061, %v1060
    %v1089 = vpack.c.b16 %v1063, %v1062
    %v1090 = vpack.c.b16 %v1065, %v1064
    %v1091 = vpack.c.b16 %v1067, %v1066
    %v1092 = vpack.c.b16 %v1069, %v1068
    %v1093 = vpack.c.b16 %v1071, %v1070
    %v1094 = vpack.c.b16 %v1073, %v1072
    %v1095 = vpack.c.b16 %v1075, %v1074
    %v1096 = vpack.c.b16 %v1077, %v1076
    %v1097 = vpack.c.b16 %v1079, %v1078
    %v1098 = vpack.c.b16 %v1081, %v1080
    %v1099 = vpack.c.b16 %v1083, %v1082
    %1116 = vmatprep.subr.bf16.mxu0 0
    %1117 = vmatpush1.bf16.msra.mxu0 %v1091
    %1118 = vmatprep.subr.bf16.mxu0 0
    %1119 = vmatpush1.bf16.msra.mxu0 %v1090
    %1120 = vmatprep.subr.bf16.mxu0 0
    %1121 = vmatpush1.bf16.msra.mxu0 %v1089
    %1122 = vmatprep.subr.bf16.mxu0 0
    %1123 = vmatpush1.bf16.msra.mxu0 %v1088
    %1124 = vmatprep.subr.bf16.mxu0 0
    %1125 = vmatpush1.bf16.msra.mxu0 %v1087
    %1126 = vmatprep.subr.bf16.mxu0 0
    %1127 = vmatpush1.bf16.msra.mxu0 %v1086
    %1128 = vmatprep.subr.bf16.mxu0 0
    %1129 = vmatpush1.bf16.msra.mxu0 %v1085
    %1130 = vmatprep.subr.bf16.mxu0 0
    %1131 = vmatpush1.bf16.msra.mxu0 %v1084
    %1132 = vmatprep.subr.bf16.mxu0 0
    %1133 = vmatpush2.bf16.msra.mxu0 %v1099
    %1134 = vmatprep.subr.bf16.mxu0 0
    %1135 = vmatpush2.bf16.msra.mxu0 %v1098
    %1136 = vmatprep.subr.bf16.mxu0 0
    %1137 = vmatpush2.bf16.msra.mxu0 %v1097
    %1138 = vmatprep.subr.bf16.mxu0 0
    %1139 = vmatpush2.bf16.msra.mxu0 %v1096
    %1140 = vmatprep.subr.bf16.mxu0 0
    %1141 = vmatpush2.bf16.msra.mxu0 %v1095
    %1142 = vmatprep.subr.bf16.mxu0 0
    %1143 = vmatpush2.bf16.msra.mxu0 %v1094
    %1144 = vmatprep.subr.bf16.mxu0 0
    %1145 = vmatpush2.bf16.msra.mxu0 %v1093
    %1146 = vmatprep.subr.bf16.mxu0 0
    %1147 = vmatpush2.bf16.msra.mxu0 %v1092
    %1148 = vmatprep.mubr.bf16.mxu0 %v950
    %1149 = vmatmul.mubr.bf16.gmra.mxu0 %v949
    %v1150 = vpop.f32.mrf.mxu0
    %v1151 = vadd.f32 %v1018, %v1150
    %v1152 = vpop.f32.mrf.mxu0
    %v1153 = vpop.f32.mrf.mxu0
    %v1154 = vadd.f32 %v1018, %v1153
    %v1155 = vpop.f32.mrf.mxu0
    %1156 = vmatprep.mubr.bf16.mxu0 %v952
    %1157 = vmatmul.mubr.bf16.gmra.mxu0 %v951
    %v1158 = vpop.f32.mrf.mxu0
    %v1159 = vadd.f32 %v1018, %v1158
    %v1160 = vpop.f32.mrf.mxu0
    %v1161 = vpop.f32.mrf.mxu0
    %v1162 = vadd.f32 %v1018, %v1161
    %v1163 = vpop.f32.mrf.mxu0
    %1164 = vmatprep.mubr.bf16.mxu0 %v954
    %1165 = vmatmul.mubr.bf16.gmra.mxu0 %v953
    %v1166 = vpop.f32.mrf.mxu0
    %v1167 = vadd.f32 %v1018, %v1166
    %v1168 = vpop.f32.mrf.mxu0
    %v1169 = vpop.f32.mrf.mxu0
    %v1170 = vadd.f32 %v1018, %v1169
    %v1171 = vpop.f32.mrf.mxu0
    %1172 = vmatprep.mubr.bf16.mxu0 %v956
    %1173 = vmatmul.mubr.bf16.gmra.mxu0 %v955
    %v1174 = vpop.f32.mrf.mxu0
    %v1175 = vadd.f32 %v1018, %v1174
    %v1176 = vpop.f32.mrf.mxu0
    %v1177 = vpop.f32.mrf.mxu0
    %v1178 = vadd.f32 %v1018, %v1177
    %v1179 = vpop.f32.mrf.mxu0
    %1180 = vmatprep.mubr.bf16.mxu0 %v958
    %1181 = vmatmul.mubr.bf16.gmra.mxu0 %v957
    %v1182 = vpop.f32.mrf.mxu0
    %v1183 = vadd.f32 %v1018, %v1182
    %v1184 = vpop.f32.mrf.mxu0
    %v1185 = vpop.f32.mrf.mxu0
    %v1186 = vadd.f32 %v1018, %v1185
    %v1187 = vpop.f32.mrf.mxu0
    %1188 = vmatprep.mubr.bf16.mxu0 %v960
    %1189 = vmatmul.mubr.bf16.gmra.mxu0 %v959
    %v1190 = vpop.f32.mrf.mxu0
    %v1191 = vadd.f32 %v1018, %v1190
    %v1192 = vpop.f32.mrf.mxu0
    %v1193 = vpop.f32.mrf.mxu0
    %v1194 = vadd.f32 %v1018, %v1193
    %v1195 = vpop.f32.mrf.mxu0
    %1196 = vmatprep.mubr.bf16.mxu0 %v962
    %1197 = vmatmul.mubr.bf16.gmra.mxu0 %v961
    %v1198 = vpop.f32.mrf.mxu0
    %v1199 = vadd.f32 %v1018, %v1198
    %v1200 = vpop.f32.mrf.mxu0
    %v1201 = vpop.f32.mrf.mxu0
    %v1202 = vadd.f32 %v1018, %v1201
    %v1203 = vpop.f32.mrf.mxu0
    %1204 = vmatprep.mubr.bf16.mxu0 %v964
    %1205 = vmatmul.mubr.bf16.gmra.mxu0 %v963
    %v1206 = vpop.f32.mrf.mxu0
    %v1207 = vadd.f32 %v1018, %v1206
    %v1208 = vpop.f32.mrf.mxu0
    %v1209 = vpop.f32.mrf.mxu0
    %v1210 = vadd.f32 %v1018, %v1209
    %v1211 = vpop.f32.mrf.mxu0
    %1212 = vmatprep.mubr.bf16.mxu0 %v966
    %1213 = vmatmul.mubr.bf16.gmra.mxu0 %v965
    %v1214 = vpop.f32.mrf.mxu0
    %v1215 = vadd.f32 %v1018, %v1214
    %v1216 = vpop.f32.mrf.mxu0
    %v1217 = vpop.f32.mrf.mxu0
    %v1218 = vadd.f32 %v1018, %v1217
    %v1219 = vpop.f32.mrf.mxu0
    %1220 = vmatprep.mubr.bf16.mxu0 %v968
    %1221 = vmatmul.mubr.bf16.gmra.mxu0 %v967
    %v1222 = vpop.f32.mrf.mxu0
    %v1223 = vadd.f32 %v1018, %v1222
    %v1224 = vpop.f32.mrf.mxu0
    %v1225 = vpop.f32.mrf.mxu0
    %v1226 = vadd.f32 %v1018, %v1225
    %v1227 = vpop.f32.mrf.mxu0
    %1228 = vmatprep.mubr.bf16.mxu0 %v970
    %1229 = vmatmul.mubr.bf16.gmra.mxu0 %v969
    %v1230 = vpop.f32.mrf.mxu0
    %v1231 = vadd.f32 %v1018, %v1230
    %v1232 = vpop.f32.mrf.mxu0
    %v1233 = vpop.f32.mrf.mxu0
    %v1234 = vadd.f32 %v1018, %v1233
    %v1235 = vpop.f32.mrf.mxu0
    %1236 = vmatprep.mubr.bf16.mxu0 %v972
    %1237 = vmatmul.mubr.bf16.gmra.mxu0 %v971
    %v1238 = vpop.f32.mrf.mxu0
    %v1239 = vadd.f32 %v1018, %v1238
    %v1240 = vpop.f32.mrf.mxu0
    %v1241 = vpop.f32.mrf.mxu0
    %v1242 = vadd.f32 %v1018, %v1241
    %v1243 = vpop.f32.mrf.mxu0
    %1244 = vmatprep.mubr.bf16.mxu0 %v974
    %1245 = vmatmul.mubr.bf16.gmra.mxu0 %v973
    %v1246 = vpop.f32.mrf.mxu0
    %v1247 = vadd.f32 %v1018, %v1246
    %v1248 = vpop.f32.mrf.mxu0
    %v1249 = vpop.f32.mrf.mxu0
    %v1250 = vadd.f32 %v1018, %v1249
    %v1251 = vpop.f32.mrf.mxu0
    %1252 = vmatprep.mubr.bf16.mxu0 %v976
    %1253 = vmatmul.mubr.bf16.gmra.mxu0 %v975
    %v1254 = vpop.f32.mrf.mxu0
    %v1255 = vadd.f32 %v1018, %v1254
    %v1256 = vpop.f32.mrf.mxu0
    %v1257 = vpop.f32.mrf.mxu0
    %v1258 = vadd.f32 %v1018, %v1257
    %v1259 = vpop.f32.mrf.mxu0
    %1260 = vmatprep.mubr.bf16.mxu0 %v978
    %1261 = vmatmul.mubr.bf16.gmra.mxu0 %v977
    %v1262 = vpop.f32.mrf.mxu0
    %v1263 = vadd.f32 %v1018, %v1262
    %v1264 = vpop.f32.mrf.mxu0
    %v1265 = vpop.f32.mrf.mxu0
    %v1266 = vadd.f32 %v1018, %v1265
    %v1267 = vpop.f32.mrf.mxu0
    %1268 = vmatprep.mubr.bf16.mxu0 %v980
    %1269 = vmatmul.mubr.bf16.gmra.mxu0 %v979
    %v1270 = vpop.f32.mrf.mxu0
    %v1271 = vadd.f32 %v1018, %v1270
    %v1272 = vpop.f32.mrf.mxu0
    %v1273 = vpop.f32.mrf.mxu0
    %v1274 = vadd.f32 %v1018, %v1273
    %v1275 = vpop.f32.mrf.mxu0
    %1276 = vdwg.mxu0
    %1277 = vst [vmem:[#allocation5] sm:$0xff] %v1151
    %1278 = vst [vmem:[#allocation5 + $0x8] sm:$0xff] %v1154
    %1279 = vst [vmem:[#allocation5 + $0x10] sm:$0xff] %v1159
    %1280 = vst [vmem:[#allocation5 + $0x18] sm:$0xff] %v1162
    %1281 = vst [vmem:[#allocation5 + $0x20] sm:$0xff] %v1167
    %1282 = vst [vmem:[#allocation5 + $0x28] sm:$0xff] %v1170
    %1283 = vst [vmem:[#allocation5 + $0x30] sm:$0xff] %v1175
    %1284 = vst [vmem:[#allocation5 + $0x38] sm:$0xff] %v1178
    %1285 = vst [vmem:[#allocation5 + $0x40] sm:$0xff] %v1183
    %1286 = vst [vmem:[#allocation5 + $0x48] sm:$0xff] %v1186
    %1287 = vst [vmem:[#allocation5 + $0x50] sm:$0xff] %v1191
    %1288 = vst [vmem:[#allocation5 + $0x58] sm:$0xff] %v1194
    %1289 = vst [vmem:[#allocation5 + $0x60] sm:$0xff] %v1199
    %1290 = vst [vmem:[#allocation5 + $0x68] sm:$0xff] %v1202
    %1291 = vst [vmem:[#allocation5 + $0x70] sm:$0xff] %v1207
    %1292 = vst [vmem:[#allocation5 + $0x78] sm:$0xff] %v1210
    %1293 = vst [vmem:[#allocation5 + $0x80] sm:$0xff] %v1215
    %1294 = vst [vmem:[#allocation5 + $0x88] sm:$0xff] %v1218
    %1295 = vst [vmem:[#allocation5 + $0x90] sm:$0xff] %v1223
    %1296 = vst [vmem:[#allocation5 + $0x98] sm:$0xff] %v1226
    %1297 = vst [vmem:[#allocation5 + $0xa0] sm:$0xff] %v1231
    %1298 = vst [vmem:[#allocation5 + $0xa8] sm:$0xff] %v1234
    %1299 = vst [vmem:[#allocation5 + $0xb0] sm:$0xff] %v1239
    %1300 = vst [vmem:[#allocation5 + $0xb8] sm:$0xff] %v1242
    %1301 = vst [vmem:[#allocation5 + $0xc0] sm:$0xff] %v1247
    %1302 = vst [vmem:[#allocation5 + $0xc8] sm:$0xff] %v1250
    %1303 = vst [vmem:[#allocation5 + $0xd0] sm:$0xff] %v1255
    %1304 = vst [vmem:[#allocation5 + $0xd8] sm:$0xff] %v1258
    %1305 = vst [vmem:[#allocation5 + $0xe0] sm:$0xff] %v1263
    %1306 = vst [vmem:[#allocation5 + $0xe8] sm:$0xff] %v1266
    %1307 = vst [vmem:[#allocation5 + $0xf0] sm:$0xff] %v1271
    %1308 = vst [vmem:[#allocation5 + $0xf8] sm:$0xff] %v1274
    // Predicated region
    $region34: #{tpu_custom_call.1} parent=1 // pred_check
      _
    $region35: #{tpu_custom_call.1} parent=1 // pred_check_branch
      %1310 = sbr.rel (0) target = $region37
    $region36: #{tpu_custom_call.1} parent=1 // pred_region
      %s1312 = ssub.s32 4096, 4096
      %1313 = vsyncadd [#allocation4], %s1312
      %s1314 = sshll.u32 [#allocation5], 4
      %s1315 = int_to_ptr.vmem [resolvable:$true] %s1314
      %1320 = dma.vmem_to_hbm [thread:$0]  %s1315, 4096, %s7, [#allocation4], 128, 128, 8
    $region37: #{tpu_custom_call.1} parent=1 // pred_fallthru
      _
    // Predicated region
    $region38: #{tpu_custom_call.1} parent=1 // pred_check
      _
    $region39: #{tpu_custom_call.1} parent=1 // pred_check_branch
      %1322 = sbr.rel (0) target = $region41
    $region40: #{tpu_custom_call.1} parent=1 // pred_region
      %1323 = dma.done [#allocation4], 4096
    $region41: #{tpu_custom_call.1} parent=1 // pred_fallthru
      _
    %1324 = vsyncpa [#allocation3], 1
    %1325 = vsyncpa [#allocation4], 1

</llo_original>
